<compile_context>
chip_gen: v6e
topology: v6e:2x2x1
jax: 0.10.0
libtpu: 0.0.40
codegen_flags: <defaults>
</compile_context>

<pallas_src>
import functools

import jax
import jax.numpy as jnp
from jax import lax
from jax.experimental import pallas as pl
from jax.experimental.pallas import tpu as pltpu


def _top1_kernel(logit_ref, out_ref, *, batch: int, tile_rows: int):
    """One row tile of TOP1: emits the un-normalized partial sum as (1, 1)."""
    x = logit_ref[...].astype(jnp.float32)            # (TR, N) -> f32 in VMEM
    tr, n = x.shape

    i = pl.program_id(0)
    # Global row/col indices for this tile; eye-mask built once per tile and
    # reused (diag extraction + nothing else needs it in the TOP1 path).
    row = lax.broadcasted_iota(jnp.int32, (tr, n), 0) + i * tile_rows
    col = lax.broadcasted_iota(jnp.int32, (tr, n), 1)
    valid = row < batch                                # mask padded rows of the last tile
    eye = row == col                                   # diagonal of the full BxB matrix

    # diag(logit) for the rows of this tile, as a (TR, 1) column.
    diag_col = jnp.sum(jnp.where(eye, x, 0.0), axis=1, keepdims=True)

    # diff = -(diag - logit) = logit - diag
    diff = x - diag_col

    # Fused: one elementwise add then a single full-tile reduction
    # (2 sigmoids/element stay on the EUP; only one XLU cross-lane reduce).
    per = jax.nn.sigmoid(diff) + jax.nn.sigmoid(x * x)
    per = jnp.where(valid, per, 0.0)                   # zero padded-row garbage

    out_ref[...] = jnp.full((1, 1), jnp.sum(per), dtype=out_ref.dtype)


def _pick_tile_rows(B: int, N: int) -> int:
    """Row-tile size: whole matrix if small, else a multiple of 8 sized so the
    tile plus ~6 live f32 intermediates and the double-buffered input stay well
    inside v5e's 16 MiB default scoped VMEM (also safe for v7x's 32 MiB)."""
    if B * N * 4 <= (2 << 20):                         # whole BxB <= 2 MiB -> single block
        return B
    tr = ((2 << 20) // (4 * N)) // 8 * 8
    return int(max(8, min(512, tr)))


def top1_loss(logit, tile_rows: int | None = None):
    """JAX/Pallas equivalent of TOP1Loss().forward(logit). Returns scalar f32."""
    B, N = logit.shape
    assert B == N, "logit must be BxB (session-parallel mini-batch)"

    tr = tile_rows if tile_rows is not None else _pick_tile_rows(B, N)
    num_tiles = pl.cdiv(B, tr)

    kernel = functools.partial(_top1_kernel, batch=B, tile_rows=tr)
    partials = pl.pallas_call(
        kernel,
        out_shape=jax.ShapeDtypeStruct((num_tiles, 1), jnp.float32),
        grid=(num_tiles,),
        # Native-dtype input (no wrapper-side f32 cast); full rows per tile so
        # the per-row diagonal lives inside the tile.
        in_specs=[pl.BlockSpec((tr, N), lambda i: (i, 0))],
        out_specs=pl.BlockSpec((1, 1), lambda i: (i, 0)),
        compiler_params=pltpu.CompilerParams(
            dimension_semantics=("parallel",)),        # megacore split on v7x
    )(logit)

    # Fold both mean denominators (each 1/(B*B)) into a single constant multiply.
    return jnp.sum(partials) * jnp.float32(1.0 / (B * N))


# ---------------------------------------------------------------------------
# pure-JAX reference (mirrors the PyTorch forward)
# ---------------------------------------------------------------------------
def _top1_ref(x):
    x = x.astype(jnp.float32)
    d = jnp.diag(x)[:, None]
    diff = x - d                                       # -(diag - logit)
    return jnp.mean(jax.nn.sigmoid(diff)) + jnp.mean(jax.nn.sigmoid(x * x))


if __name__ == "__main__":
    key = jax.random.PRNGKey(0)

    # Case 1: default TOP1Loss at B=8 (single tile), f32 input.
    B = 8
    logit = jax.random.normal(key, (B, B), dtype=jnp.float32)
    loss = jax.block_until_ready(top1_loss(logit))
    ref = _top1_ref(logit)
    assert jnp.allclose(loss, ref, rtol=1e-5, atol=1e-5), (loss, ref)

    # Case 2: bf16 input (no wrapper cast — kernel casts in VMEM).
    logit_bf16 = logit.astype(jnp.bfloat16)
    loss_bf16 = jax.block_until_ready(top1_loss(logit_bf16))
    ref_bf16 = _top1_ref(logit_bf16)
    assert jnp.allclose(loss_bf16, ref_bf16, rtol=1e-2, atol=1e-2), (loss_bf16, ref_bf16)

    # Case 3: multi-tile path with a ragged last tile (B=20, TR=8 -> 3 tiles,
    # last tile has 4 padded rows masked out).
    B2 = 20
    logit2 = jax.random.normal(jax.random.PRNGKey(1), (B2, B2), dtype=jnp.float32)
    loss2 = jax.block_until_ready(top1_loss(logit2, tile_rows=8))
    ref2 = _top1_ref(logit2)
    assert jnp.allclose(loss2, ref2, rtol=1e-5, atol=1e-5), (loss2, ref2)

    print("KERNEL_OK")
</pallas_src>

<mosaic_0001>
module attributes {stable_mosaic.version = 11 : i64} {
  func.func @_top1_kernel(%arg0: i32, %arg1: memref<8x8xf32, #tpu.memory_space<vmem>>, %arg2: memref<1x1xf32, #tpu.memory_space<vmem>>) attributes {dimension_semantics = [#tpu.dimension_semantics<parallel>], iteration_bounds = array<i64: 1>, scalar_prefetch = 0 : i64, scratch_operands = 0 : i64, tpu.core_type = #tpu.core_type<tc>, window_params = [{transform_indices = @transform_0, window_bounds = array<i64: 8, 8>}, {transform_indices = @transform_1, window_bounds = array<i64: 1, 1>}]} {
    %c0 = arith.constant 0 : index
    %c0_0 = arith.constant 0 : index
    %0 = vector.load %arg1[%c0, %c0_0] : memref<8x8xf32, #tpu.memory_space<vmem>>, vector<8x8xf32>
    %1 = tpu.iota {dimensions = array<i32: 0>} : vector<8x8xi32>
    %c8_i32 = arith.constant 8 : i32
    %2 = arith.muli %arg0, %c8_i32 : i32
    %3 = vector.broadcast %2 : i32 to vector<8x8xi32>
    %4 = arith.addi %1, %3 : vector<8x8xi32>
    %5 = tpu.iota {dimensions = array<i32: 1>} : vector<8x8xi32>
    %c8_i32_1 = arith.constant 8 : i32
    %6 = vector.broadcast %c8_i32_1 : i32 to vector<8x8xi32>
    %7 = arith.cmpi slt, %4, %6 : vector<8x8xi32>
    %8 = arith.cmpi eq, %4, %5 : vector<8x8xi32>
    %cst = arith.constant 0.000000e+00 : f32
    %9 = vector.broadcast %cst : f32 to vector<8x8xf32>
    %10 = arith.select %8, %0, %9 : vector<8x8xi1>, vector<8x8xf32>
    %cst_2 = arith.constant dense<0.000000e+00> : vector<8xf32>
    %11 = vector.multi_reduction <add>, %10, %cst_2 [1] : vector<8x8xf32> to vector<8xf32>
    %12 = vector.shape_cast %11 : vector<8xf32> to vector<8x1xf32>
    %13 = vector.broadcast %12 : vector<8x1xf32> to vector<8x8xf32>
    %14 = arith.subf %0, %13 : vector<8x8xf32>
    %15 = arith.negf %14 : vector<8x8xf32>
    %16 = math.exp %15 : vector<8x8xf32>
    %cst_3 = arith.constant 1.000000e+00 : f32
    %17 = vector.broadcast %cst_3 : f32 to vector<8x8xf32>
    %18 = arith.addf %17, %16 : vector<8x8xf32>
    %19 = arith.divf %17, %18 : vector<8x8xf32>
    %20 = arith.mulf %0, %0 : vector<8x8xf32>
    %21 = arith.negf %20 : vector<8x8xf32>
    %22 = math.exp %21 : vector<8x8xf32>
    %cst_4 = arith.constant 1.000000e+00 : f32
    %23 = vector.broadcast %cst_4 : f32 to vector<8x8xf32>
    %24 = arith.addf %23, %22 : vector<8x8xf32>
    %25 = arith.divf %23, %24 : vector<8x8xf32>
    %26 = arith.addf %19, %25 : vector<8x8xf32>
    %cst_5 = arith.constant 0.000000e+00 : f32
    %27 = vector.broadcast %cst_5 : f32 to vector<8x8xf32>
    %28 = arith.select %7, %26, %27 : vector<8x8xi1>, vector<8x8xf32>
    %29 = vector.shape_cast %28 : vector<8x8xf32> to vector<1x8x8xf32>
    %cst_6 = arith.constant dense<0.000000e+00> : vector<1xf32>
    %30 = vector.multi_reduction <add>, %29, %cst_6 [1, 2] : vector<1x8x8xf32> to vector<1xf32>
    %31 = vector.shape_cast %30 : vector<1xf32> to vector<1x1x1xf32>
    %32 = vector.extract %31[0, 0, 0] : f32 from vector<1x1x1xf32>
    %33 = vector.broadcast %32 : f32 to vector<1x1xf32>
    %c0_7 = arith.constant 0 : index
    %c0_8 = arith.constant 0 : index
    %34 = vector.load %arg2[%c0_7, %c0_8] : memref<1x1xf32, #tpu.memory_space<vmem>>, vector<1x1xf32>
    tpu.vector_store %arg2[%c0_7, %c0_8], %33 {strides = array<i32>} : memref<1x1xf32, #tpu.memory_space<vmem>>, vector<1x1xf32>,
    return
  }
  func.func @transform_0(%arg0: i32) -> (i32, i32) {
    %c0_i32 = arith.constant 0 : i32
    %c0_i32_0 = arith.constant 0 : i32
    return %arg0, %c0_i32 : i32, i32
  }
  func.func @transform_1(%arg0: i32) -> (i32, i32) {
    %c0_i32 = arith.constant 0 : i32
    %c0_i32_0 = arith.constant 0 : i32
    return %arg0, %c0_i32 : i32, i32
  }
}

</mosaic_0001>

<llo_original>
// kernel: tpu_custom_call.1
$region0: #{tpu_custom_call.1}
  #allocation0 [shape = 'u32[]', space=smem, size = 0x4, offset = 0x4, fixed_abs, tag = 'smem constant byte address 0x4 - core index']
  #allocation1 [shape = 'u32[144,128]{1,0:T(1,128)}', space=vmem, size = 0x12000, scoped, tag = 'internal scratch']
  %s0 = inlined_call_operand.hbm [shape: f32[8,8], index: 0, kind: input, shape index: {}]
  %s1 = inlined_call_operand.hbm [shape: f32[1,1], index: 1, kind: output, shape index: {}]
  %s2 = sld [smem:[#allocation0]]
  $region18: #{tpu_custom_call.1} parent=0
    _
  %s4 = ssub.s32 1, %s2
  %s5 = scalar_select 0, %s4, %s2
  $region1: #{tpu_custom_call.1} parent=0
    #allocation2 [shape = 'u8[4096]{0}', space=vmem, size = 0x1000, scoped, tag = 'input window, operand 0, single buffered']
    #allocation3 [shape = 's32[1]{0}', space=sflag, size = 0x4, scoped, tag = 'scoped memory for tpu_custom_call.1']
    #allocation4 [shape = 's32[1]{0}', space=sflag, size = 0x4, scoped, tag = 'scoped memory for tpu_custom_call.1']
    #allocation5 [shape = 'u8[512]{0}', space=vmem, size = 0x400, scoped, tag = 'output window, operand 0, single buffered']
    %6 = vsyncpa [#allocation3], 0
    %7 = vsyncpa [#allocation4], 0
    // Predicated region
    $region2: #{tpu_custom_call.1} parent=1 // pred_check
      _
    $region3: #{tpu_custom_call.1} parent=1 // pred_check_branch
      %9 = sbr.rel (0) target = $region5
    $region4: #{tpu_custom_call.1} parent=1 // pred_region
      %s11 = ssub.s32 128, 128
      %12 = vsyncadd [#allocation3], %s11
      %s14 = sshll.u32 [#allocation2], 4
      %s15 = int_to_ptr.vmem [resolvable:$true] %s14
      %17 = dma.hbm_to_vmem [thread:$0]  %s0, 128, %s15, [#allocation3]
    $region5: #{tpu_custom_call.1} parent=1 // pred_fallthru
      _
    // Predicated region
    $region6: #{tpu_custom_call.1} parent=1 // pred_check
      _
    $region7: #{tpu_custom_call.1} parent=1 // pred_check_branch
      %19 = sbr.rel (0) target = $region9
    $region8: #{tpu_custom_call.1} parent=1 // pred_region
      %20 = dma.done [#allocation3], 128
    $region9: #{tpu_custom_call.1} parent=1 // pred_fallthru
      _
    %v21 = vld [vmem:[#allocation2] sm:$0xff]
    %v22 = vlaneseq
    %v23 = vshrl.u32 %v22, 7
    %s24 = smul.u32 0, 8
    %v25 = vstv %s24
    %v26 = vadd.s32 %v23, %v25
    %v27 = vlaneseq
    %v28 = vand.u32 %v27, 127
    %vm29 = vcmp.lt.s32.totalorder %v26, 8
    %vm30 = vcmp.eq.s32.totalorder %v26, %v28
    %v31 = vsel %vm30, %v21, 0.0
    %vm32 = vcmask 64512
    %v33 = vsel %vm32, %v31, 0.0
    %34 = vadd.xlane.f32.xlu0 %v33
    %v35 = vpop.xlane.xlu0 %34
    %v36 = vsub.f32 %v21, %v35
    %v37 = vxor.u32 %v36, 2147483648
    %v38 = vmul.f32 %v37, 1.442695
    %v39 = vpow.pop %v38
    %v40 = vadd.f32 %v39, 1.0
    %v41 = vrcp.pop %v40
    %v42 = vmul.f32 1.0, %v41
    %v43 = vmul.f32 %v21, %v21
    %v44 = vxor.u32 %v43, 2147483648
    %v45 = vmul.f32 %v44, 1.442695
    %v46 = vpow.pop %v45
    %v47 = vadd.f32 %v46, 1.0
    %v48 = vrcp.pop %v47
    %v49 = vmul.f32 1.0, %v48
    %v50 = vadd.f32 %v42, %v49
    %v51 = vsel %vm29, %v50, 0.0
    %v52 = vsel %vm32, %v51, 0.0
    %53 = vadd.xlane.f32.xlu0 %v52
    %v54 = vpop.xlane.xlu0 %53
    %v55 = vrot.slane %v54, 4
    %v56 = vadd.f32 %v54, %v55
    %v57 = vrot.slane %v56, 2
    %v58 = vadd.f32 %v56, %v57
    %v59 = vrot.slane %v58, 1
    %v60 = vadd.f32 %v58, %v59
    %s61 = vtos %v60
    %v62 = vstv %s61
    %vm63 = vcmask 0
    %64 = vst.msk [vmem:[#allocation5] sm:$0x1] %vm63, %v62
    // Predicated region
    $region10: #{tpu_custom_call.1} parent=1 // pred_check
      _
    $region11: #{tpu_custom_call.1} parent=1 // pred_check_branch
      %66 = sbr.rel (0) target = $region13
    $region12: #{tpu_custom_call.1} parent=1 // pred_region
      %s68 = ssub.s32 16, 16
      %69 = vsyncadd [#allocation4], %s68
      %s71 = sshll.u32 [#allocation5], 4
      %s72 = int_to_ptr.vmem [resolvable:$true] %s71
      %74 = dma.vmem_to_hbm [thread:$0]  %s72, 16, %s1, [#allocation4]
    $region13: #{tpu_custom_call.1} parent=1 // pred_fallthru
      _
    // Predicated region
    $region14: #{tpu_custom_call.1} parent=1 // pred_check
      _
    $region15: #{tpu_custom_call.1} parent=1 // pred_check_branch
      %76 = sbr.rel (0) target = $region17
    $region16: #{tpu_custom_call.1} parent=1 // pred_region
      %77 = dma.done [#allocation4], 16
    $region17: #{tpu_custom_call.1} parent=1 // pred_fallthru
      _
    %78 = vsyncpa [#allocation3], 1
    %79 = vsyncpa [#allocation4], 1

</llo_original>
